<compile_context>
chip_gen: v5e
topology: v5e:2x2
jax: 0.10.0
libtpu: 0.0.40
codegen_flags: <defaults>
</compile_context>

<pallas_src>
import functools

import jax
import jax.numpy as jnp
from jax.experimental import pallas as pl
from jax.experimental.pallas import tpu as pltpu


def _round_up(v, m):
    return (v + m - 1) // m * m


def _cdiv(a, b):
    return -(-a // b)


def _vmem_capacity_bytes(default=64 * 1024 * 1024):
    """Physical VMEM per core; conservative default (v7x-sized) if unknown."""
    try:
        info = pltpu.get_tpu_info()
        cap = getattr(info, "vmem_capacity_bytes", None)
        if cap:
            return int(cap)
    except Exception:
        pass
    return default


# --------------------- fused single-pass kernel (slab fits VMEM) ---------------------
def _fused_kernel(x_ref, w_ref, b_ref, o_ref, *, inv_hw):
    # x_ref: (1, C, HW) or (1, C, 8, HW//8); w_ref: (C, C) [out_c, in_c]; b_ref: (C, 1)
    xf = x_ref[...].astype(jnp.float32)
    if len(x_ref.shape) == 3:
        col = jnp.sum(xf, axis=2, keepdims=True)[0]                 # (C, 1)
    else:
        col = jnp.sum(xf, axis=(2, 3), keepdims=True)[0, :, :, 0]   # (C, 1)
    mean_col = col * inv_hw
    se = jnp.dot(w_ref[...], mean_col,
                 preferred_element_type=jnp.float32) + b_ref[...]   # (C, 1)
    gate = jnp.clip(se * (1.0 / 6.0) + 0.5, 0.0, 1.0)               # hardsigmoid
    if len(x_ref.shape) == 3:
        g = gate[None]                                              # (1, C, 1)
    else:
        g = gate[None, :, :, None]                                  # (1, C, 1, 1)
    # multiply in the input dtype (native bf16 on v6e/v7x, f32 otherwise)
    o_ref[...] = (x_ref[...] * g.astype(x_ref.dtype)).astype(o_ref.dtype)


# ------------------ two-pass fallback: spatial sum, then gated multiply ---------------
def _sum_kernel(x_ref, sum_ref, *, hw, t_hw):
    # x_ref: (1, c_blk, t_hw); sum_ref: (1, c_blk, 1) f32, resident across the HW axis.
    t = pl.program_id(2)

    @pl.when(t == 0)
    def _():
        sum_ref[...] = jnp.zeros_like(sum_ref)

    xf = x_ref[...].astype(jnp.float32)
    if hw % t_hw != 0:  # compile-time branch: mask the padded tail tile
        pos = t * t_hw + jax.lax.broadcasted_iota(jnp.int32, xf.shape, 2)
        xf = jnp.where(pos < hw, xf, 0.0)
    sum_ref[...] += jnp.sum(xf, axis=2, keepdims=True)


def _scale_kernel(x_ref, gate_ref, o_ref):
    # x_ref: (1, c_blk, t_hw); gate_ref: (1, c_blk, 1) f32 broadcasting over lanes.
    g = gate_ref[...].astype(x_ref.dtype)
    o_ref[...] = (x_ref[...] * g).astype(o_ref.dtype)


def effective_se_layer(x_nchw, weight, bias, *, force_two_pass=False,
                       max_block_bytes=None):
    """x_nchw: (N, C, H, W); weight: (C, C) [out_c, in_c]; bias: (C,) -> (N, C, H, W)."""
    N, C, H, W = x_nchw.shape
    HW = H * W
    itemsize = x_nchw.dtype.itemsize

    x3 = x_nchw.reshape(N, C, HW)                     # free view, stays NCHW order
    w = weight.astype(jnp.float32)                    # (C, C) [out_c, in_c]
    b_col = bias.astype(jnp.float32).reshape(C, 1)    # (C, 1)

    # Per-generation budgets: ~48 MiB on v7x (64 MiB phys), ~112 MiB on v5e/v6e.
    vmem_cap = _vmem_capacity_bytes()
    vmem_limit = max(32 << 20, min(vmem_cap - (16 << 20), 112 << 20))
    if max_block_bytes is None:
        max_block_bytes = max(256 * 1024, vmem_limit // 10)

    # For C < 8, view the slab as (C, 8, HW//8) to fill sublanes -- only when the
    # resulting lane dim stays a multiple of 128 (else lane padding would dominate).
    use_4d = (C < 8) and (HW % 8 == 0) and ((HW // 8) % 128 == 0)
    if use_4d:
        slab = C * HW * itemsize                                    # no VMEM padding
    else:
        slab = _round_up(C, 8) * _round_up(HW, 128) * itemsize      # padded VMEM bytes
    w_vmem = _round_up(C, 8) * _round_up(C, 128) * 4
    # x(2 bufs) + out(2 bufs) + W(2 bufs, constant but default-double-buffered) + slack
    fused_need = 4 * slab + 2 * w_vmem + (2 << 20)

    if (not force_two_pass) and fused_need <= vmem_limit:
        # ---------- fused single pass: read x once, write out once ----------
        if use_4d:
            xv = x3.reshape(N, C, 8, HW // 8)
            blk = (1, C, 8, HW // 8)
            idx = lambda n: (n, 0, 0, 0)
        else:
            xv = x3
            blk = (1, C, HW)
            idx = lambda n: (n, 0, 0)
        out = pl.pallas_call(
            functools.partial(_fused_kernel, inv_hw=1.0 / HW),
            out_shape=jax.ShapeDtypeStruct(xv.shape, x_nchw.dtype),
            grid=(N,),
            in_specs=[
                pl.BlockSpec(blk, idx),
                pl.BlockSpec((C, C), lambda n: (0, 0)),
                pl.BlockSpec((C, 1), lambda n: (0, 0)),
            ],
            out_specs=pl.BlockSpec(blk, idx),
            compiler_params=pltpu.CompilerParams(
                dimension_semantics=("parallel",),
                vmem_limit_bytes=vmem_limit),
        )(xv, w, b_col)
        return out.reshape(N, C, H, W)

    # --------------------------- two-pass fallback ---------------------------
    # Channel block: multiple of 8 (or full C). Splitting C bounds VMEM at large C
    # and gives the reduction grid parallel work for the v7x megacore at small N.
    if C > 128:
        c_blk = 128
    elif C >= 16 and C % 16 == 0:
        c_blk = C // 2
    else:
        c_blk = C
    n_c = _cdiv(C, c_blk)

    c_rows = _round_up(c_blk, 8)
    if HW <= 128:
        t_hw = HW
    else:
        max_lanes = max(128, max_block_bytes // max(1, c_rows * itemsize))
        t_hw = min(HW, max(128, (max_lanes // 128) * 128))
    n_t = _cdiv(HW, t_hw)

    # Pass 1: per-(sample, channel) spatial sums, accumulated across HW tiles.
    sums = pl.pallas_call(
        functools.partial(_sum_kernel, hw=HW, t_hw=t_hw),
        out_shape=jax.ShapeDtypeStruct((N, C, 1), jnp.float32),
        grid=(N, n_c, n_t),
        in_specs=[pl.BlockSpec((1, c_blk, t_hw), lambda n, c, t: (n, c, t))],
        out_specs=pl.BlockSpec((1, c_blk, 1), lambda n, c, t: (n, c, 0)),
        compiler_params=pltpu.CompilerParams(
            dimension_semantics=("parallel", "parallel", "arbitrary"),
            vmem_limit_bytes=vmem_limit),
    )(x3)

    # Tiny batched gate = hardsigmoid(mean @ W^T + b) in plain XLA: keeps the CxC
    # weight out of the Pallas pipeline and amortizes the MXU push over all N rows.
    mean = sums[:, :, 0] * (1.0 / HW)                                     # (N, C)
    se = jnp.einsum("ni,oi->no", mean, w) + bias.astype(jnp.float32)[None, :]
    gate = jnp.clip(se * (1.0 / 6.0) + 0.5, 0.0, 1.0)[:, :, None]         # (N, C, 1)

    # Pass 2: out = x * gate, fully parallel grid, lane-dense blocks.
    out = pl.pallas_call(
        _scale_kernel,
        out_shape=jax.ShapeDtypeStruct((N, C, HW), x_nchw.dtype),
        grid=(N, n_c, n_t),
        in_specs=[
            pl.BlockSpec((1, c_blk, t_hw), lambda n, c, t: (n, c, t)),
            pl.BlockSpec((1, c_blk, 1), lambda n, c, t: (n, c, 0)),
        ],
        out_specs=pl.BlockSpec((1, c_blk, t_hw), lambda n, c, t: (n, c, t)),
        compiler_params=pltpu.CompilerParams(
            dimension_semantics=("parallel", "parallel", "parallel"),
            vmem_limit_bytes=vmem_limit),
    )(x3, gate)

    return out.reshape(N, C, H, W)


def _reference(x_nchw, weight, bias):
    # Pure-JAX reference mirroring the PyTorch forward.
    x_se = jnp.mean(x_nchw, axis=(2, 3), keepdims=True)                   # (N, C, 1, 1)
    x_se = jnp.einsum("nkab,ck->ncab", x_se, weight) + bias[None, :, None, None]
    x_se = jnp.clip(x_se / 6.0 + 0.5, 0.0, 1.0)
    return x_nchw * x_se


def _check(out, ref, tag):
    assert out.shape == ref.shape, f"{tag}: shape mismatch"
    assert jnp.allclose(out, ref, atol=1e-5, rtol=1e-5), f"{tag}: mismatch vs reference"


if __name__ == "__main__":
    key = jax.random.PRNGKey(0)
    kx, kw, kb, kx2, kx3, kw3, kb3, kx4 = jax.random.split(key, 8)

    # Conv2d(C, C, 1) params, PyTorch [out_c, in_c] layout.
    C = 4
    weight = jax.random.normal(kw, (C, C), dtype=jnp.float32) * 0.1
    bias = jax.random.normal(kb, (C,), dtype=jnp.float32) * 0.1

    # 1) Fused single-pass path, 3-D view (primary small test).
    x = jax.random.normal(kx, (2, C, 16, 16), dtype=jnp.float32)
    out = jax.block_until_ready(effective_se_layer(x, weight, bias))
    _check(out, _reference(x, weight, bias), "fused-3d")

    # 2) Fused single-pass path with the C<8 sublane-filling (N, C, 8, HW//8) view.
    x2 = jax.random.normal(kx2, (2, C, 32, 32), dtype=jnp.float32)
    out2 = jax.block_until_ready(effective_se_layer(x2, weight, bias))
    _check(out2, _reference(x2, weight, bias), "fused-4d")

    # 3) Two-pass fallback with a non-128-divisible H*W (exercises the masked tail).
    x3 = jax.random.normal(kx3, (2, C, 20, 20), dtype=jnp.float32)
    out3 = jax.block_until_ready(
        effective_se_layer(x3, weight, bias, force_two_pass=True,
                           max_block_bytes=8 * 1024))
    _check(out3, _reference(x3, weight, bias), "two-pass-tail")

    # 4) Two-pass fallback with channel blocking (C split across the parallel grid).
    C4 = 32
    w4 = jax.random.normal(kw3, (C4, C4), dtype=jnp.float32) * 0.1
    b4 = jax.random.normal(kb3, (C4,), dtype=jnp.float32) * 0.1
    x4 = jax.random.normal(kx4, (1, C4, 24, 24), dtype=jnp.float32)
    out4 = jax.block_until_ready(
        effective_se_layer(x4, w4, b4, force_two_pass=True,
                           max_block_bytes=8 * 1024))
    _check(out4, _reference(x4, w4, b4), "two-pass-cblk")

    print("KERNEL_OK")
</pallas_src>

<mosaic_0001>
module attributes {stable_mosaic.version = 11 : i64} {
  func.func @_fused_kernel(%arg0: i32, %arg1: memref<1x4x256xf32, #tpu.memory_space<vmem>>, %arg2: memref<4x4xf32, #tpu.memory_space<vmem>>, %arg3: memref<4x1xf32, #tpu.memory_space<vmem>>, %arg4: memref<1x4x256xf32, #tpu.memory_space<vmem>>) attributes {dimension_semantics = [#tpu.dimension_semantics<parallel>], iteration_bounds = array<i64: 2>, scalar_prefetch = 0 : i64, scratch_operands = 0 : i64, tpu.core_type = #tpu.core_type<tc>, window_params = [{transform_indices = @transform_0, window_bounds = array<i64: 1, 4, 256>}, {pipeline_mode = #tpu.pipeline_mode<synchronous>, transform_indices = @transform_1, window_bounds = array<i64: 4, 4>}, {pipeline_mode = #tpu.pipeline_mode<synchronous>, transform_indices = @transform_2, window_bounds = array<i64: 4, 1>}, {transform_indices = @transform_3, window_bounds = array<i64: 1, 4, 256>}]} {
    %c0 = arith.constant 0 : index
    %c0_0 = arith.constant 0 : index
    %c0_1 = arith.constant 0 : index
    %0 = vector.load %arg1[%c0, %c0_0, %c0_1] : memref<1x4x256xf32, #tpu.memory_space<vmem>>, vector<1x4x256xf32>
    %cst = arith.constant dense<0.000000e+00> : vector<1x4xf32>
    %1 = vector.multi_reduction <add>, %0, %cst [2] : vector<1x4x256xf32> to vector<1x4xf32>
    %2 = vector.shape_cast %1 : vector<1x4xf32> to vector<1x4x1xf32>
    %3 = vector.shape_cast %2 : vector<1x4x1xf32> to vector<4x1xf32>
    %cst_2 = arith.constant 3.906250e-03 : f32
    %4 = vector.broadcast %cst_2 : f32 to vector<4x1xf32>
    %5 = arith.mulf %3, %4 : vector<4x1xf32>
    %c0_3 = arith.constant 0 : index
    %c0_4 = arith.constant 0 : index
    %6 = vector.load %arg2[%c0_3, %c0_4] : memref<4x4xf32, #tpu.memory_space<vmem>>, vector<4x4xf32>
    %cst_5 = arith.constant dense<0.000000e+00> : vector<4x1xf32>
    %7 = tpu.matmul %6, %5, %cst_5 {dimension_numbers = #tpu.dot_dimension_numbers<[1], [0], [0], [1], [0, 0, 1, 1], [], []>} : vector<4x4xf32>, vector<4x1xf32>, vector<4x1xf32> -> vector<4x1xf32>
    %c0_6 = arith.constant 0 : index
    %c0_7 = arith.constant 0 : index
    %8 = vector.load %arg3[%c0_6, %c0_7] : memref<4x1xf32, #tpu.memory_space<vmem>>, vector<4x1xf32>
    %9 = arith.addf %7, %8 : vector<4x1xf32>
    %cst_8 = arith.constant 0.166666672 : f32
    %10 = vector.broadcast %cst_8 : f32 to vector<4x1xf32>
    %11 = arith.mulf %9, %10 : vector<4x1xf32>
    %cst_9 = arith.constant 5.000000e-01 : f32
    %12 = vector.broadcast %cst_9 : f32 to vector<4x1xf32>
    %13 = arith.addf %11, %12 : vector<4x1xf32>
    %cst_10 = arith.constant 0.000000e+00 : f32
    %cst_11 = arith.constant 1.000000e+00 : f32
    %14 = vector.broadcast %cst_10 : f32 to vector<4x1xf32>
    %15 = arith.maximumf %14, %13 : vector<4x1xf32>
    %16 = vector.broadcast %cst_11 : f32 to vector<4x1xf32>
    %17 = arith.minimumf %16, %15 : vector<4x1xf32>
    %18 = vector.shape_cast %17 : vector<4x1xf32> to vector<1x4x1xf32>
    %c0_12 = arith.constant 0 : index
    %c0_13 = arith.constant 0 : index
    %c0_14 = arith.constant 0 : index
    %19 = vector.load %arg1[%c0_12, %c0_13, %c0_14] : memref<1x4x256xf32, #tpu.memory_space<vmem>>, vector<1x4x256xf32>
    %20 = vector.broadcast %18 : vector<1x4x1xf32> to vector<1x4x256xf32>
    %21 = arith.mulf %19, %20 : vector<1x4x256xf32>
    %c0_15 = arith.constant 0 : index
    %c0_16 = arith.constant 0 : index
    %c0_17 = arith.constant 0 : index
    %22 = vector.load %arg4[%c0_15, %c0_16, %c0_17] : memref<1x4x256xf32, #tpu.memory_space<vmem>>, vector<1x4x256xf32>
    tpu.vector_store %arg4[%c0_15, %c0_16, %c0_17], %21 {strides = array<i32>} : memref<1x4x256xf32, #tpu.memory_space<vmem>>, vector<1x4x256xf32>,
    return
  }
  func.func @transform_0(%arg0: i32) -> (i32, i32, i32) {
    %c0_i32 = arith.constant 0 : i32
    %c0_i32_0 = arith.constant 0 : i32
    %c0_i32_1 = arith.constant 0 : i32
    return %arg0, %c0_i32, %c0_i32_0 : i32, i32, i32
  }
  func.func @transform_1(%arg0: i32) -> (i32, i32) {
    %c0_i32 = arith.constant 0 : i32
    %c0_i32_0 = arith.constant 0 : i32
    %c0_i32_1 = arith.constant 0 : i32
    return %c0_i32, %c0_i32_0 : i32, i32
  }
  func.func @transform_2(%arg0: i32) -> (i32, i32) {
    %c0_i32 = arith.constant 0 : i32
    %c0_i32_0 = arith.constant 0 : i32
    %c0_i32_1 = arith.constant 0 : i32
    return %c0_i32, %c0_i32_0 : i32, i32
  }
  func.func @transform_3(%arg0: i32) -> (i32, i32, i32) {
    %c0_i32 = arith.constant 0 : i32
    %c0_i32_0 = arith.constant 0 : i32
    %c0_i32_1 = arith.constant 0 : i32
    return %arg0, %c0_i32, %c0_i32_0 : i32, i32, i32
  }
}

</mosaic_0001>

<llo_original>
// kernel: tpu_custom_call.1
$region0: #{tpu_custom_call.1}
  #allocation0 [shape = 'u32[]', space=smem, size = 0x4, offset = 0x4, fixed_abs, tag = 'smem constant byte address 0x4 - core index']
  #allocation1 [shape = 'u32[72,128]{1,0:T(1,128)}', space=vmem, size = 0x9000, scoped, tag = 'internal scratch']
  %s0 = inlined_call_operand.hbm [shape: f32[2,4,256], index: 0, kind: input, shape index: {}]
  %s1 = inlined_call_operand.vmem [shape: f32[4,4], index: 1, kind: input, shape index: {}]
  %s2 = inlined_call_operand.vmem [shape: f32[4,1], index: 2, kind: input, shape index: {}]
  %s3 = inlined_call_operand.hbm [shape: f32[2,4,256], index: 3, kind: output, shape index: {}]
  %s4 = sld [smem:[#allocation0]]
  $region49: #{tpu_custom_call.1} parent=0
    _
  %s6 = ssub.s32 1, %s4
  %s7 = scalar_select 0, %s6, %s4
  $region1: #{tpu_custom_call.1} parent=0
    #allocation2 [shape = 'u8[8192]{0}', space=vmem, size = 0x2000, scoped, tag = 'input window, operand 0']
    #allocation3 [shape = 's32[2]{0}', space=sflag, size = 0x8, scoped, tag = 'scoped memory for tpu_custom_call.1']
    #allocation4 [shape = 's32[2]{0}', space=sflag, size = 0x8, scoped, tag = 'scoped memory for tpu_custom_call.1']
    #allocation5 [shape = 'u8[8192]{0}', space=vmem, size = 0x2000, scoped, tag = 'output window, operand 0']
    %8 = vsyncpa [#allocation3], 0
    %s9 = scalar_lea.sflag [#allocation3], 1
    %10 = vsyncpa %s9, 0
    %11 = vsyncpa [#allocation4], 0
    %s12 = scalar_lea.sflag [#allocation4], 1
    %13 = vsyncpa %s12, 0
    loop: start=0, step=1, limit=4
    $region2: #{tpu_custom_call.1} parent=1 // loop_pre_header
      _
    $region3: #{tpu_custom_call.1} parent=1 // loop_header
      %s15 = sphi 0, %s19
      %p16 = scmp.ge.s32.totalorder %s15, 4
      %s25 = sphi 0, %s27
      %s28 = sphi 0, %s25
      %s29 = sphi 0, %s28
      %s45 = sphi 0, %s29
      %s49 = sphi 0, %s49
      %s51 = sphi 0, %s49
      %s52 = sphi 0, %s51
      %s66 = sphi 0, %s52
      %s70 = sphi 0, %s70
      %s72 = sphi 0, %s70
      %s73 = sphi 0, %s72
      %s87 = sphi 0, %s73
      %s93 = sphi 0, %s95
      %s96 = sphi 0, %s93
      %s97 = sphi 0, %s96
      %s113 = sphi 0, %s97
    $region4: #{tpu_custom_call.1} parent=1 // loop_header_branch
      %18 = sbr.rel (%p16) target = $region8
    $region5: #{tpu_custom_call.1} parent=1 // loop_body
      %s20 = ssub.s32 %s15, 1
      %s21 = ssub.s32 %s15, 2
      %s22 = sadd.s32 %s15, 1
      %s23 = ssub.s32 %s15, %s22
      %p24 = scmp.eq.s32.totalorder %s23, 0
      %s26 = sadd.s32 %s25, 1
      %s27 = scalar_select %p24, %s25, %s26
      %p30 = pneg %p24
      %p31 = scmp.eq.s32.totalorder %s15, 1
      %p32 = por %p30, %p31
      %p33 = scmp.ne.s32.totalorder %s25, %s28
      %p34 = scmp.eq.s32.totalorder %s15, 0
      %p35 = por %p33, %p34
      %p36 = scmp.ne.s32.totalorder %s25, %s28
      %p37 = scmp.eq.s32.totalorder %s20, 1
      %p38 = por %p36, %p37
      %p39 = scmp.ne.s32.totalorder %s28, %s29
      %p40 = scmp.eq.s32.totalorder %s20, 0
      %p41 = por %p39, %p40
      %p42 = scmp.ne.s32.totalorder %s28, %s29
      %p43 = scmp.eq.s32.totalorder %s21, 1
      %p44 = por %p42, %p43
      %p46 = scmp.ne.s32.totalorder %s29, %s45
      %p47 = scmp.eq.s32.totalorder %s21, 0
      %p48 = por %p46, %p47
      %s50 = sadd.s32 %s49, 1
      %p53 = scmp.eq.s32.totalorder %s15, 1
      %p54 = scmp.ne.s32.totalorder %s49, %s51
      %p55 = scmp.eq.s32.totalorder %s15, 0
      %p56 = por %p54, %p55
      %p57 = scmp.ne.s32.totalorder %s49, %s51
      %p58 = scmp.eq.s32.totalorder %s20, 1
      %p59 = por %p57, %p58
      %p60 = scmp.ne.s32.totalorder %s51, %s52
      %p61 = scmp.eq.s32.totalorder %s20, 0
      %p62 = por %p60, %p61
      %p63 = scmp.ne.s32.totalorder %s51, %s52
      %p64 = scmp.eq.s32.totalorder %s21, 1
      %p65 = por %p63, %p64
      %p67 = scmp.ne.s32.totalorder %s52, %s66
      %p68 = scmp.eq.s32.totalorder %s21, 0
      %p69 = por %p67, %p68
      %s71 = sadd.s32 %s70, 1
      %p74 = scmp.eq.s32.totalorder %s15, 1
      %p75 = scmp.ne.s32.totalorder %s70, %s72
      %p76 = scmp.eq.s32.totalorder %s15, 0
      %p77 = por %p75, %p76
      %p78 = scmp.ne.s32.totalorder %s70, %s72
      %p79 = scmp.eq.s32.totalorder %s20, 1
      %p80 = por %p78, %p79
      %p81 = scmp.ne.s32.totalorder %s72, %s73
      %p82 = scmp.eq.s32.totalorder %s20, 0
      %p83 = por %p81, %p82
      %p84 = scmp.ne.s32.totalorder %s72, %s73
      %p85 = scmp.eq.s32.totalorder %s21, 1
      %p86 = por %p84, %p85
      %p88 = scmp.ne.s32.totalorder %s73, %s87
      %p89 = scmp.eq.s32.totalorder %s21, 0
      %p90 = por %p88, %p89
      %s91 = ssub.s32 %s15, %s22
      %p92 = scmp.eq.s32.totalorder %s91, 0
      %s94 = sadd.s32 %s93, 1
      %s95 = scalar_select %p92, %s93, %s94
      %p98 = pneg %p92
      %p99 = scmp.eq.s32.totalorder %s15, 1
      %p100 = por %p98, %p99
      %p101 = scmp.ne.s32.totalorder %s93, %s96
      %p102 = scmp.eq.s32.totalorder %s15, 0
      %p103 = por %p101, %p102
      %p104 = scmp.ne.s32.totalorder %s93, %s96
      %p105 = scmp.eq.s32.totalorder %s20, 1
      %p106 = por %p104, %p105
      %p107 = scmp.ne.s32.totalorder %s96, %s97
      %p108 = scmp.eq.s32.totalorder %s20, 0
      %p109 = por %p107, %p108
      %p110 = scmp.ne.s32.totalorder %s96, %s97
      %p111 = scmp.eq.s32.totalorder %s21, 1
      %p112 = por %p110, %p111
      %p114 = scmp.ne.s32.totalorder %s97, %s113
      %p115 = scmp.eq.s32.totalorder %s21, 0
      %p116 = por %p114, %p115
      %p117 = scmp.le.s32.totalorder 1, %s15
      %p118 = scmp.lt.s32.totalorder %s15, 3
      %p119 = pnand %p117, %p118
      %p120 = pneg %p119
      // Predicated region
      $region9: #{tpu_custom_call.1} parent=5 // pred_check
        _
      $region10: #{tpu_custom_call.1} parent=5 // pred_check_branch
        %122 = sbr.rel (%p119) target = $region12
      $region11: #{tpu_custom_call.1} parent=5 // pred_region
        %s123 = ssub.s32 %s15, 1
        // Predicated region
        $region13: #{tpu_custom_call.1} parent=11 // pred_check
          %p124 = pneg %p62
        $region14: #{tpu_custom_call.1} parent=11 // pred_check_branch
          %126 = sbr.rel (%p124) target = $region16
        $region15: #{tpu_custom_call.1} parent=11 // pred_region
          _
        $region16: #{tpu_custom_call.1} parent=11 // pred_fallthru
          _
        // Predicated region
        $region17: #{tpu_custom_call.1} parent=11 // pred_check
          %p127 = pneg %p83
        $region18: #{tpu_custom_call.1} parent=11 // pred_check_branch
          %129 = sbr.rel (%p127) target = $region20
        $region19: #{tpu_custom_call.1} parent=11 // pred_region
          _
        $region20: #{tpu_custom_call.1} parent=11 // pred_fallthru
          _
      $region12: #{tpu_custom_call.1} parent=5 // pred_fallthru
        _
      %p130 = scmp.lt.s32.totalorder %s15, 2
      // Predicated region
      $region21: #{tpu_custom_call.1} parent=5 // pred_check
        %p131 = pneg %p130
      $region22: #{tpu_custom_call.1} parent=5 // pred_check_branch
        %133 = sbr.rel (%p131) target = $region24
      $region23: #{tpu_custom_call.1} parent=5 // pred_region
        // Predicated region
        $region25: #{tpu_custom_call.1} parent=23 // pred_check
          %p134 = pneg %p35
        $region26: #{tpu_custom_call.1} parent=23 // pred_check_branch
          %136 = sbr.rel (%p134) target = $region28
        $region27: #{tpu_custom_call.1} parent=23 // pred_region
          %s137 = sand.u32 %s25, 1
          %s138 = scalar_lea.sflag [#allocation3], %s137
          %s139 = sand.u32 %s25, 1
          %s140 = smul.addr %s139, 8
          %s141 = scalar_lea.vmem [#allocation2], %s140
          %143 = vsyncadd %s138, 0
          %s144 = smul.addr %s15, 2
          %s145 = smul.addr %s144, 4
          %s146 = scalar_lea.hbm %s0, %s145
          %s148 = sshll.u32 %s146, 4
          %s149 = int_to_ptr.hbm [resolvable:$true] %s148
          %s150 = sshll.u32 %s141, 4
          %s151 = int_to_ptr.vmem [resolvable:$true] %s150
          %153 = dma.hbm_to_vmem [thread:$0]  %s149, 128, %s151, %s138
        $region28: #{tpu_custom_call.1} parent=23 // pred_fallthru
          _
      $region24: #{tpu_custom_call.1} parent=5 // pred_fallthru
        _
      %p154 = scmp.le.s32.totalorder 1, %s15
      %p155 = scmp.lt.s32.totalorder %s15, 3
      %p156 = pnand %p154, %p155
      %p157 = pneg %p156
      // Predicated region
      $region29: #{tpu_custom_call.1} parent=5 // pred_check
        _
      $region30: #{tpu_custom_call.1} parent=5 // pred_check_branch
        %159 = sbr.rel (%p156) target = $region32
      $region31: #{tpu_custom_call.1} parent=5 // pred_region
        %s160 = ssub.s32 %s15, 1
        %s161 = sand.u32 %s28, 1
        %s162 = scalar_lea.sflag [#allocation3], %s161
        %s163 = sand.u32 %s28, 1
        %s164 = smul.addr %s163, 8
        %s165 = scalar_lea.vmem [#allocation2], %s164
        // Predicated region
        $region33: #{tpu_custom_call.1} parent=31 // pred_check
          %p166 = pneg %p41
        $region34: #{tpu_custom_call.1} parent=31 // pred_check_branch
          %168 = sbr.rel (%p166) target = $region36
        $region35: #{tpu_custom_call.1} parent=31 // pred_region
          %170 = dma.done %s162, 128
        $region36: #{tpu_custom_call.1} parent=31 // pred_fallthru
          _
        %s171 = sand.u32 %s28, 1
        %s172 = scalar_lea.sflag [#allocation3], %s171
        %s173 = sand.u32 %s28, 1
        %s174 = smul.addr %s173, 8
        %s175 = scalar_lea.vmem [#allocation2], %s174
        %p176 = pneg %p41
        %p177 = pneg %p38
        %p178 = pneg %p62
        %p179 = pneg %p59
        %p180 = pneg %p83
        %p181 = pneg %p80
        %p182 = pneg %p109
        %p183 = pneg %p106
        %s184 = sand.u32 %s96, 1
        %s185 = scalar_lea.sflag [#allocation4], %s184
        %s186 = sand.u32 %s96, 1
        %s187 = smul.addr %s186, 8
        %s188 = scalar_lea.vmem [#allocation5], %s187
        %v189 = vld [vmem:[%s165] sm:$0xff]
        %191 = vst [vmem:[#allocation1] ss:$2 sm:$0xff] %v189
        %v192 = vld.sshfl [vmem:[#allocation1] sm:$0xff pattern:$0x75316420]
        %v193 = vld.sshfl [vmem:[#allocation1 + $0x8] sm:$0xff pattern:$0x75316420]
        %vm196 = vcmask 1043456
        %v197 = vsel %vm196, %v192, 0.0
        %v198 = vsel %vm196, %v193, 0.0
        %v199 = vadd.f32 %v197, %v198
        %200 = vadd.xlane.f32.xlu0 %v199
        %v201 = vpop.xlane.xlu0 %200
        %v202 = vmul.f32 %v201, 0.00390625
        %v203 = vld [vmem:[%s1] sm:$0xf]
        %v204 = vld [vmem:[%s2] sm:$0xf]
        %vm205 = vcmask 31744
        %v207 = vsel %vm205, %v203, 0
        %v210 = vsel %vm196, %v202, 0
        %212 = vmatpush.msra.mxu0 0.0
        %213 = vmatpush.msra.mxu0 0.0
        %214 = vmatpush.msra.mxu0 0.0
        %215 = vmatpush.msra.mxu0 0.0
        %216 = vmatpush.msra.mxu0 0.0
        %217 = vmatpush.msra.mxu0 0.0
        %218 = vmatpush.msra.mxu0 0.0
        %219 = vmatpush.msra.mxu0 0.0
        %220 = vmatpush.msra.mxu0 0.0
        %221 = vmatpush.msra.mxu0 0.0
        %222 = vmatpush.msra.mxu0 0.0
        %223 = vmatpush.msra.mxu0 0.0
        %224 = vmatpush.msra.mxu0 0.0
        %225 = vmatpush.msra.mxu0 0.0
        %226 = vmatpush.msra.mxu0 0.0
        %227 = vmatpush.msra.mxu0 %v210
        %228 = vmatmul.f32.gmra.mxu0 %v207
        %v229 = vpop.f32.mrf.mxu0
        %v230 = vadd.f32 %v204, %v229
        %231 = vdwg.mxu0
        %v232 = vmul.f32 %v230, 0.16666667
        %v233 = vadd.f32 %v232, 0.5
        %v234 = vmax.f32 %v233, 0.0
        %v235 = vmin.f32 %v234, 1.0
        %237 = vset.pattern.permute.xlu0 0
        %238 = vperm.xlu0 %237, %v235
        %v239 = vpop.permute.xlu0 %238
        %v241 = vunpack.c.l.s4 839922192
        %v242 = vunpack.c.0.s8 %v241
        %v243 = vperm.slane %v239, %v242
        %v245 = vmul.f32 %v189, %v243
        %246 = vst [vmem:[%s188] sm:$0xff] %v245
        %s247 = sand.u32 %s96, 1
        %s248 = scalar_lea.sflag [#allocation4], %s247
        %s249 = sand.u32 %s96, 1
        %s250 = smul.addr %s249, 8
        %s251 = scalar_lea.vmem [#allocation5], %s250
        // Predicated region
        $region37: #{tpu_custom_call.1} parent=31 // pred_check
          %p252 = pneg %p106
        $region38: #{tpu_custom_call.1} parent=31 // pred_check_branch
          %254 = sbr.rel (%p252) target = $region40
        $region39: #{tpu_custom_call.1} parent=31 // pred_region
          %256 = vsyncadd %s248, 0
          %s257 = smul.addr %s20, 2
          %s258 = smul.addr %s257, 4
          %s259 = scalar_lea.hbm %s3, %s258
          %s261 = sshll.u32 %s251, 4
          %s262 = int_to_ptr.vmem [resolvable:$true] %s261
          %s263 = sshll.u32 %s259, 4
          %s264 = int_to_ptr.hbm [resolvable:$true] %s263
          %266 = dma.vmem_to_hbm [thread:$0]  %s262, 128, %s264, %s248
        $region40: #{tpu_custom_call.1} parent=31 // pred_fallthru
          _
      $region32: #{tpu_custom_call.1} parent=5 // pred_fallthru
        _
      %p267 = scmp.le.s32.totalorder 2, %s15
      // Predicated region
      $region41: #{tpu_custom_call.1} parent=5 // pred_check
        %p268 = pneg %p267
      $region42: #{tpu_custom_call.1} parent=5 // pred_check_branch
        %270 = sbr.rel (%p268) target = $region44
      $region43: #{tpu_custom_call.1} parent=5 // pred_region
        %s271 = ssub.s32 %s15, 2
        // Predicated region
        $region45: #{tpu_custom_call.1} parent=43 // pred_check
          %p272 = pneg %p112
        $region46: #{tpu_custom_call.1} parent=43 // pred_check_branch
          %274 = sbr.rel (%p272) target = $region48
        $region47: #{tpu_custom_call.1} parent=43 // pred_region
          %s275 = sand.u32 %s97, 1
          %s276 = scalar_lea.sflag [#allocation4], %s275
          %s277 = sand.u32 %s97, 1
          %s278 = smul.addr %s277, 8
          %s279 = scalar_lea.vmem [#allocation5], %s278
          %281 = dma.done %s276, 128
        $region48: #{tpu_custom_call.1} parent=43 // pred_fallthru
          _
      $region44: #{tpu_custom_call.1} parent=5 // pred_fallthru
        _
    $region6: #{tpu_custom_call.1} parent=1 // loop_footer
      %s19 = sadd.s32 1, %s15
    $region7: #{tpu_custom_call.1} parent=1 // loop_footer_branch
      %14 = sbr.rel target = $region3
    $region8: #{tpu_custom_call.1} parent=1 // loop_exit
      _
    %282 = vsyncpa [#allocation3], 1
    %s283 = scalar_lea.sflag [#allocation3], 1
    %284 = vsyncpa %s283, 1
    %285 = vsyncpa [#allocation4], 1
    %s286 = scalar_lea.sflag [#allocation4], 1
    %287 = vsyncpa %s286, 1

</llo_original>
